<compile_context>
chip_gen: v5e
topology: v5e:2x2
jax: 0.10.0
libtpu: 0.0.40
codegen_flags: <defaults>
</compile_context>

<pallas_src>
import math
import functools

import jax
import jax.numpy as jnp
import numpy as np
from jax.experimental import pallas as pl
from jax.experimental.pallas import tpu as pltpu


_POWERS = ('0', '1', '2', 'a0', 'a1', 'a2')
_TD_CAP = 2048                       # max contraction (sublane) tile
_VMEM_LIMIT = 32 * 1024 * 1024       # above v5e's 16 MiB scoped default


def _round_up(x: int, m: int) -> int:
    return ((x + m - 1) // m) * m


def _transform(inner, power):
    """Elementwise energy transform T(inner); masked entries are dropped by a
    jnp.where select afterwards, so no +diag(ones) term is needed."""
    if power == '0':
        return -jnp.log(2.0 - 2.0 * inner)
    if power == '1':
        return jax.lax.rsqrt(2.0 - 2.0 * inner)       # EUP rsqrt, not pow(-0.5)
    if power == '2':
        return pl.reciprocal(2.0 - 2.0 * inner)       # EUP reciprocal, not pow(-1)
    # Angular variants (kept for completeness; jnp.arccos lowering in Mosaic is
    # not exercised by the self-test below).
    acos = jnp.arccos(inner) / math.pi + 1e-4
    if power == 'a0':
        return -jnp.log(acos)
    if power == 'a1':
        return pl.reciprocal(acos)
    if power == 'a2':
        r = pl.reciprocal(acos)
        return r * r
    raise ValueError(f"unknown power {power!r}")


def _tile_energy(gram, ncol, nrow, i, j, *, power, half, n_true, tm, tn):
    """Masked/weighted energy of one (tm, tn) Gram tile (rows i*tm.., cols j*tn..)."""
    nmat = ncol * nrow + 1e-6                         # (tm,1)*(1,tn) -> (tm,tn)
    row = jax.lax.broadcasted_iota(jnp.int32, (tm, tn), 0) + i * tm
    col = jax.lax.broadcasted_iota(jnp.int32, (tm, tn), 1) + j * tn
    in_b = (row < n_true) & (col < n_true)

    if power == '2':
        # single-reciprocal restructure: 1/(2 - 2*G/M) == M / (2M - 2G)
        t_plus = nmat * pl.reciprocal(2.0 * nmat - 2.0 * gram)
        t_minus = (nmat * pl.reciprocal(2.0 * nmat + 2.0 * gram)) if half else None
    else:
        inner = gram * pl.reciprocal(nmat)
        t_plus = _transform(inner, power)
        t_minus = _transform(-inner, power) if half else None

    keep_p = in_b & (row - col >= 2)
    if half:
        # half_mhe [[G,-G],[-G,G]] block structure folded onto the base-N
        # lower triangle:
        #   weight(+I) = 2 on a-b>=2
        #   weight(-I) = 2 on a>b, 1 on a==b, minus 1 at (a,b) == (N-1, 0)
        keep_m = in_b & (row >= col)
        w_m = (2.0
               - (row == col).astype(jnp.float32)
               - ((row == n_true - 1) & (col == 0)).astype(jnp.float32))
        val = (jnp.where(keep_p, 2.0 * t_plus, 0.0)
               + jnp.where(keep_m, w_m * t_minus, 0.0))
    else:
        val = jnp.where(keep_p, t_plus, 0.0)
    return val


def _thomson_kernel(i_blk_ref, j_blk_ref, fi_ref, fj_ref, ncol_ref, nrow_ref,
                    out_ref, *scratch, power, half, n_true, tm, tn, kd):
    t = pl.program_id(0)          # live-pair index
    i = i_blk_ref[t]              # Gram row block (units of tm)
    j = j_blk_ref[t]              # Gram col block (units of tn)

    def finalize(gram):
        val = _tile_energy(gram, ncol_ref[...], nrow_ref[...], i, j,
                           power=power, half=half, n_true=n_true, tm=tm, tn=tn)
        # In-kernel sublane reduce -> lane-dense (1, tn) partial per pair.
        out_ref[...] = jnp.sum(val, axis=0, keepdims=True)[None, :, :]

    if kd == 1:
        # Single contraction step: no scratch round-trip needed.
        gram = jax.lax.dot_general(
            fi_ref[...], fj_ref[...],
            dimension_numbers=(((0,), (0,)), ((), ())),
            preferred_element_type=jnp.float32)
        finalize(gram)
    else:
        acc_ref = scratch[0]
        k = pl.program_id(1)

        @pl.when(k == 0)
        def _init():
            acc_ref[...] = jnp.zeros_like(acc_ref)

        acc_ref[...] += jax.lax.dot_general(
            fi_ref[...], fj_ref[...],
            dimension_numbers=(((0,), (0,)), ((), ())),
            preferred_element_type=jnp.float32)

        @pl.when(k == kd - 1)
        def _fin():
            finalize(acc_ref[...])


class ThomsonPallas:
    """JAX/Pallas port of shopee/mhe.py::Thomson (forward only)."""

    def __init__(self, n_filt, power, model='half_mhe'):
        if power not in _POWERS:
            raise ValueError(f"unknown power {power!r}")
        if model not in ('mhe', 'half_mhe'):
            raise ValueError(f"unknown model {model!r}")
        self.n_filt = n_filt
        self.power = power
        self.model = model

    def __call__(self, filt):
        N = self.n_filt
        half = (self.model == 'half_mhe')
        f = jnp.reshape(filt, (-1, N)).astype(jnp.float32)     # (D, N) base columns
        D = f.shape[0]

        n_total = 2 * N if half else N
        cnt = n_total * (n_total - 1) / 2.0
        scale = 0.1 if self.power in ('a1', 'a2') else 1.0

        # Gram tile: lane (col) tile tn; sublane (row) tile tm (asymmetric when
        # there are multiple row blocks -> halves RHS re-fetch traffic).
        tn = 128 if N <= 128 else 256
        tm = tn if N <= tn else 2 * tn
        n_pad = _round_up(N, tm)              # tm is a multiple of tn
        ni, nj = n_pad // tm, n_pad // tn

        # Contraction axis: one k step whenever the double-buffered panels fit
        # VMEM (LHS panel then stays resident per row block); else stream D.
        d_pad8 = _round_up(D, 8)
        if d_pad8 <= _TD_CAP:
            td, d_pad, kd = d_pad8, d_pad8, 1
        else:
            td, d_pad = _TD_CAP, _round_up(D, _TD_CAP)
            kd = d_pad // td

        # Host-side enumeration of live Gram tiles (lower-triangle band only):
        # dead tiles cost neither DMA nor grid-step overhead, and every live
        # step is equal work (balanced megacore split of the "parallel" axis).
        margin = 0 if half else 2
        pi, pj = [], []
        for i in range(ni):
            a_max = min(i * tm + tm - 1, N - 1)
            for j in range(nj):
                if j * tn <= a_max - margin:
                    pi.append(i)
                    pj.append(j)
        if not pi:                               # N too small: no kept entries
            return jnp.zeros((), jnp.float32)
        num_pairs = len(pi)
        i_blk = jnp.asarray(pi, jnp.int32)
        j_blk = jnp.asarray(pj, jnp.int32)

        f_pad = jnp.pad(f, ((0, d_pad - D), (0, n_pad - N)))

        # Column norms: O(D*N) wrapper glue; reference epsilons preserved:
        # norm_mat = (||a||+1e-4)(||b||+1e-4) + 1e-6 (built inside the kernel).
        norm_row = jnp.sqrt(jnp.sum(f_pad * f_pad, axis=0, keepdims=True)) + 1e-4
        norm_col = jnp.transpose(norm_row)                    # (n_pad, 1)

        kernel = functools.partial(
            _thomson_kernel, power=self.power, half=half,
            n_true=N, tm=tm, tn=tn, kd=kd)

        scratch = [pltpu.VMEM((tm, tn), jnp.float32)] if kd > 1 else []

        n_trans = 2 if half else 1
        cost = pl.CostEstimate(
            flops=2 * num_pairs * tm * tn * d_pad,
            transcendentals=num_pairs * tm * tn * n_trans,
            bytes_accessed=4 * (num_pairs * d_pad * tn + ni * d_pad * tm
                                + num_pairs * (tm + 2 * tn)))

        partials = pl.pallas_call(
            kernel,
            out_shape=jax.ShapeDtypeStruct((num_pairs, 1, tn), jnp.float32),
            grid_spec=pltpu.PrefetchScalarGridSpec(
                num_scalar_prefetch=2,
                grid=(num_pairs, kd),
                in_specs=[
                    pl.BlockSpec((td, tm), lambda t, k, ib, jb: (k, ib[t])),
                    pl.BlockSpec((td, tn), lambda t, k, ib, jb: (k, jb[t])),
                    pl.BlockSpec((tm, 1), lambda t, k, ib, jb: (ib[t], 0)),
                    pl.BlockSpec((1, tn), lambda t, k, ib, jb: (0, jb[t])),
                ],
                out_specs=pl.BlockSpec((1, 1, tn), lambda t, k, ib, jb: (t, 0, 0)),
                scratch_shapes=scratch,
            ),
            compiler_params=pltpu.CompilerParams(
                dimension_semantics=("parallel", "arbitrary"),
                vmem_limit_bytes=_VMEM_LIMIT),
            cost_estimate=cost,
        )(i_blk, j_blk, f_pad, f_pad, norm_col, norm_row)

        return scale * jnp.sum(partials) / (cnt + 1e-8)


def thomson_ref(filt, n_filt, power, model='half_mhe'):
    """Pure-JAX reference mirroring the PyTorch code exactly."""
    filt = jnp.reshape(filt, (-1, n_filt)).astype(jnp.float32)
    if model == 'half_mhe':
        filt = jnp.concatenate([filt, -filt], axis=1)
        n_filt *= 2
    filt_norm = jnp.sqrt(jnp.sum(filt * filt, axis=0, keepdims=True)) + 1e-4
    norm_mat = filt_norm.T @ filt_norm + 1e-6
    inner = (filt.T @ filt) / norm_mat
    ones = jnp.ones(n_filt, jnp.float32)
    cnt = n_filt * (n_filt - 1) / 2.0
    if power == '0':
        final = -jnp.log(2.0 - 2.0 * inner + jnp.diag(ones))
        final = final - jnp.triu(final, -1)
        return 1.0 * final.sum() / (1e-8 + cnt)
    elif power == '1':
        final = (2.0 - 2.0 * inner + jnp.diag(ones)) ** -0.5
        final = final - jnp.triu(final, -1)
        return 1.0 * final.sum() / (cnt + 1e-8)
    elif power == '2':
        final = (2.0 - 2.0 * inner + jnp.diag(ones)) ** -1.0
        final = final - jnp.triu(final, -1)
        return 1.0 * final.sum() / (cnt + 1e-8)
    elif power == 'a0':
        final = -jnp.log(jnp.arccos(inner) / math.pi + 1e-4)
        final = final - jnp.triu(final, -1)
        return 1.0 * final.sum() / (cnt + 1e-8)
    elif power == 'a1':
        final = (jnp.arccos(inner) / math.pi + 1e-4) ** -1.0
        final = final - jnp.triu(final, -1)
        return 0.1 * final.sum() / (cnt + 1e-8)
    elif power == 'a2':
        final = (jnp.arccos(inner) / math.pi + 1e-4) ** -2.0
        final = final - jnp.triu(final, -1)
        return 0.1 * final.sum() / (cnt + 1e-8)
    raise ValueError(power)


if __name__ == "__main__":
    key = jax.random.PRNGKey(0)
    k1, k2, k3, k4 = jax.random.split(key, 4)

    # Configurations exercising the different code paths:
    #  1) tiny half_mhe bank            : D=32,   N=16  (symmetry path, 1 pair)
    #  2) many filters, mhe             : D=8,    N=288 (asym tile 512x256, 2 pairs)
    #  3) deep filters, half_mhe        : D=2560, N=16  (kd=2 accumulator path)
    #  4) many filters, half_mhe        : D=8,    N=300 (asym tile + symmetry weights)
    cases = [
        (jax.random.normal(k1, (4, 8, 16), dtype=jnp.float32), 16,
         [('0', 'half_mhe'), ('1', 'half_mhe')]),
        (jax.random.normal(k2, (2, 4, 288), dtype=jnp.float32), 288,
         [('2', 'mhe'), ('0', 'mhe')]),
        (jax.random.normal(k3, (40, 8, 8, 16), dtype=jnp.float32), 16,
         [('1', 'half_mhe'), ('2', 'half_mhe')]),
        (jax.random.normal(k4, (2, 4, 300), dtype=jnp.float32), 300,
         [('0', 'half_mhe')]),
    ]

    for x, n_filt, combos in cases:
        for power, model in combos:
            mod = ThomsonPallas(n_filt=n_filt, power=power, model=model)
            loss = jax.block_until_ready(mod(x))
            ref = jax.block_until_ready(thomson_ref(x, n_filt, power, model))
            if not np.allclose(np.asarray(loss), np.asarray(ref),
                               rtol=3e-4, atol=1e-6):
                raise AssertionError(
                    f"mismatch power={power} model={model} shape={x.shape}: "
                    f"kernel={loss} ref={ref}")

    print("KERNEL_OK")
</pallas_src>

<mosaic_0001>
module attributes {stable_mosaic.version = 11 : i64} {
  func.func @_thomson_kernel(%arg0: i32, %arg1: i32, %arg2: memref<1xi32, #tpu.memory_space<smem>>, %arg3: memref<1xi32, #tpu.memory_space<smem>>, %arg4: memref<32x128xf32, #tpu.memory_space<vmem>>, %arg5: memref<32x128xf32, #tpu.memory_space<vmem>>, %arg6: memref<128x1xf32, #tpu.memory_space<vmem>>, %arg7: memref<1x128xf32, #tpu.memory_space<vmem>>, %arg8: memref<1x1x128xf32, #tpu.memory_space<vmem>>) attributes {dimension_semantics = [#tpu.dimension_semantics<parallel>, #tpu.dimension_semantics<arbitrary>], iteration_bounds = array<i64: 1, 1>, scalar_prefetch = 2 : i64, scratch_operands = 0 : i64, tpu.core_type = #tpu.core_type<tc>, window_params = [{transform_indices = @transform_0, window_bounds = array<i64: 32, 128>}, {transform_indices = @transform_1, window_bounds = array<i64: 32, 128>}, {transform_indices = @transform_2, window_bounds = array<i64: 128, 1>}, {transform_indices = @transform_3, window_bounds = array<i64: 1, 128>}, {transform_indices = @transform_4, window_bounds = array<i64: 1, 1, 128>}]} {
    %0 = arith.index_cast %arg0 : i32 to index
    %1 = memref.load %arg2[%0] : memref<1xi32, #tpu.memory_space<smem>>
    %2 = arith.index_cast %arg0 : i32 to index
    %3 = memref.load %arg3[%2] : memref<1xi32, #tpu.memory_space<smem>>
    %c0 = arith.constant 0 : index
    %c0_0 = arith.constant 0 : index
    %4 = vector.load %arg4[%c0, %c0_0] : memref<32x128xf32, #tpu.memory_space<vmem>>, vector<32x128xf32>
    %c0_1 = arith.constant 0 : index
    %c0_2 = arith.constant 0 : index
    %5 = vector.load %arg5[%c0_1, %c0_2] : memref<32x128xf32, #tpu.memory_space<vmem>>, vector<32x128xf32>
    %cst = arith.constant dense<0.000000e+00> : vector<128x128xf32>
    %6 = tpu.matmul %4, %5, %cst {dimension_numbers = #tpu.dot_dimension_numbers<[0], [0], [1], [1], [0, 1, 1, 1], [], []>} : vector<32x128xf32>, vector<32x128xf32>, vector<128x128xf32> -> vector<128x128xf32>
    %c0_3 = arith.constant 0 : index
    %c0_4 = arith.constant 0 : index
    %7 = vector.load %arg6[%c0_3, %c0_4] : memref<128x1xf32, #tpu.memory_space<vmem>>, vector<128x1xf32>
    %c0_5 = arith.constant 0 : index
    %c0_6 = arith.constant 0 : index
    %8 = vector.load %arg7[%c0_5, %c0_6] : memref<1x128xf32, #tpu.memory_space<vmem>>, vector<1x128xf32>
    %9 = vector.broadcast %7 : vector<128x1xf32> to vector<128x128xf32>
    %10 = vector.broadcast %8 : vector<1x128xf32> to vector<128x128xf32>
    %11 = arith.mulf %9, %10 : vector<128x128xf32>
    %cst_7 = arith.constant 9.99999997E-7 : f32
    %12 = vector.broadcast %cst_7 : f32 to vector<128x128xf32>
    %13 = arith.addf %11, %12 : vector<128x128xf32>
    %14 = tpu.iota {dimensions = array<i32: 0>} : vector<128x128xi32>
    %c128_i32 = arith.constant 128 : i32
    %15 = arith.muli %1, %c128_i32 : i32
    %16 = vector.broadcast %15 : i32 to vector<128x128xi32>
    %17 = arith.addi %14, %16 : vector<128x128xi32>
    %18 = tpu.iota {dimensions = array<i32: 1>} : vector<128x128xi32>
    %c128_i32_8 = arith.constant 128 : i32
    %19 = arith.muli %3, %c128_i32_8 : i32
    %20 = vector.broadcast %19 : i32 to vector<128x128xi32>
    %21 = arith.addi %18, %20 : vector<128x128xi32>
    %c16_i32 = arith.constant 16 : i32
    %22 = vector.broadcast %c16_i32 : i32 to vector<128x128xi32>
    %23 = arith.cmpi slt, %17, %22 : vector<128x128xi32>
    %c16_i32_9 = arith.constant 16 : i32
    %24 = vector.broadcast %c16_i32_9 : i32 to vector<128x128xi32>
    %25 = arith.cmpi slt, %21, %24 : vector<128x128xi32>
    %26 = arith.andi %23, %25 : vector<128x128xi1>
    %27 = tpu.reciprocal %13 : vector<128x128xf32> -> vector<128x128xf32>
    %28 = arith.mulf %6, %27 : vector<128x128xf32>
    %cst_10 = arith.constant 2.000000e+00 : f32
    %29 = vector.broadcast %cst_10 : f32 to vector<128x128xf32>
    %30 = arith.mulf %29, %28 : vector<128x128xf32>
    %cst_11 = arith.constant 2.000000e+00 : f32
    %31 = vector.broadcast %cst_11 : f32 to vector<128x128xf32>
    %32 = arith.subf %31, %30 : vector<128x128xf32>
    %33 = math.log %32 : vector<128x128xf32>
    %cst_12 = arith.constant 0.000000e+00 : f32
    %34 = vector.broadcast %cst_12 : f32 to vector<128x128xf32>
    %35 = arith.subf %34, %33 : vector<128x128xf32>
    %cst_13 = arith.constant 0.000000e+00 : f32
    %36 = vector.broadcast %cst_13 : f32 to vector<128x128xf32>
    %37 = arith.subf %36, %28 : vector<128x128xf32>
    %cst_14 = arith.constant 2.000000e+00 : f32
    %38 = vector.broadcast %cst_14 : f32 to vector<128x128xf32>
    %39 = arith.mulf %38, %37 : vector<128x128xf32>
    %cst_15 = arith.constant 2.000000e+00 : f32
    %40 = vector.broadcast %cst_15 : f32 to vector<128x128xf32>
    %41 = arith.subf %40, %39 : vector<128x128xf32>
    %42 = math.log %41 : vector<128x128xf32>
    %cst_16 = arith.constant 0.000000e+00 : f32
    %43 = vector.broadcast %cst_16 : f32 to vector<128x128xf32>
    %44 = arith.subf %43, %42 : vector<128x128xf32>
    %45 = arith.subi %17, %21 : vector<128x128xi32>
    %c2_i32 = arith.constant 2 : i32
    %46 = vector.broadcast %c2_i32 : i32 to vector<128x128xi32>
    %47 = arith.cmpi sge, %45, %46 : vector<128x128xi32>
    %48 = arith.andi %26, %47 : vector<128x128xi1>
    %49 = arith.cmpi sge, %17, %21 : vector<128x128xi32>
    %50 = arith.andi %26, %49 : vector<128x128xi1>
    %51 = arith.cmpi eq, %17, %21 : vector<128x128xi32>
    %52 = arith.extui %51 : vector<128x128xi1> to vector<128x128xi32>
    %53 = arith.sitofp %52 : vector<128x128xi32> to vector<128x128xf32>
    %cst_17 = arith.constant 2.000000e+00 : f32
    %54 = vector.broadcast %cst_17 : f32 to vector<128x128xf32>
    %55 = arith.subf %54, %53 : vector<128x128xf32>
    %c15_i32 = arith.constant 15 : i32
    %56 = vector.broadcast %c15_i32 : i32 to vector<128x128xi32>
    %57 = arith.cmpi eq, %17, %56 : vector<128x128xi32>
    %c0_i32 = arith.constant 0 : i32
    %58 = vector.broadcast %c0_i32 : i32 to vector<128x128xi32>
    %59 = arith.cmpi eq, %21, %58 : vector<128x128xi32>
    %60 = arith.andi %57, %59 : vector<128x128xi1>
    %61 = arith.extui %60 : vector<128x128xi1> to vector<128x128xi32>
    %62 = arith.sitofp %61 : vector<128x128xi32> to vector<128x128xf32>
    %63 = arith.subf %55, %62 : vector<128x128xf32>
    %cst_18 = arith.constant 2.000000e+00 : f32
    %64 = vector.broadcast %cst_18 : f32 to vector<128x128xf32>
    %65 = arith.mulf %64, %35 : vector<128x128xf32>
    %cst_19 = arith.constant 0.000000e+00 : f32
    %66 = vector.broadcast %cst_19 : f32 to vector<128x128xf32>
    %67 = arith.select %48, %65, %66 : vector<128x128xi1>, vector<128x128xf32>
    %68 = arith.mulf %63, %44 : vector<128x128xf32>
    %cst_20 = arith.constant 0.000000e+00 : f32
    %69 = vector.broadcast %cst_20 : f32 to vector<128x128xf32>
    %70 = arith.select %50, %68, %69 : vector<128x128xi1>, vector<128x128xf32>
    %71 = arith.addf %67, %70 : vector<128x128xf32>
    %cst_21 = arith.constant dense<0.000000e+00> : vector<128xf32>
    %72 = vector.multi_reduction <add>, %71, %cst_21 [0] : vector<128x128xf32> to vector<128xf32>
    %73 = vector.shape_cast %72 : vector<128xf32> to vector<1x128xf32>
    %74 = vector.shape_cast %73 : vector<1x128xf32> to vector<1x1x128xf32>
    %c0_22 = arith.constant 0 : index
    %c0_23 = arith.constant 0 : index
    %c0_24 = arith.constant 0 : index
    %75 = vector.load %arg8[%c0_22, %c0_23, %c0_24] : memref<1x1x128xf32, #tpu.memory_space<vmem>>, vector<1x1x128xf32>
    tpu.vector_store %arg8[%c0_22, %c0_23, %c0_24], %74 {strides = array<i32>} : memref<1x1x128xf32, #tpu.memory_space<vmem>>, vector<1x1x128xf32>,
    return
  }
  func.func @transform_0(%arg0: i32, %arg1: i32, %arg2: memref<1xi32, #tpu.memory_space<smem>>, %arg3: memref<1xi32, #tpu.memory_space<smem>>) -> (i32, i32) {
    %0 = arith.index_cast %arg0 : i32 to index
    %1 = memref.load %arg2[%0] : memref<1xi32, #tpu.memory_space<smem>>
    %c0_i32 = arith.constant 0 : i32
    return %arg1, %1 : i32, i32
  }
  func.func @transform_1(%arg0: i32, %arg1: i32, %arg2: memref<1xi32, #tpu.memory_space<smem>>, %arg3: memref<1xi32, #tpu.memory_space<smem>>) -> (i32, i32) {
    %0 = arith.index_cast %arg0 : i32 to index
    %1 = memref.load %arg3[%0] : memref<1xi32, #tpu.memory_space<smem>>
    %c0_i32 = arith.constant 0 : i32
    return %arg1, %1 : i32, i32
  }
  func.func @transform_2(%arg0: i32, %arg1: i32, %arg2: memref<1xi32, #tpu.memory_space<smem>>, %arg3: memref<1xi32, #tpu.memory_space<smem>>) -> (i32, i32) {
    %0 = arith.index_cast %arg0 : i32 to index
    %1 = memref.load %arg2[%0] : memref<1xi32, #tpu.memory_space<smem>>
    %c0_i32 = arith.constant 0 : i32
    %c0_i32_0 = arith.constant 0 : i32
    return %1, %c0_i32 : i32, i32
  }
  func.func @transform_3(%arg0: i32, %arg1: i32, %arg2: memref<1xi32, #tpu.memory_space<smem>>, %arg3: memref<1xi32, #tpu.memory_space<smem>>) -> (i32, i32) {
    %0 = arith.index_cast %arg0 : i32 to index
    %1 = memref.load %arg3[%0] : memref<1xi32, #tpu.memory_space<smem>>
    %c0_i32 = arith.constant 0 : i32
    %c0_i32_0 = arith.constant 0 : i32
    return %c0_i32, %1 : i32, i32
  }
  func.func @transform_4(%arg0: i32, %arg1: i32, %arg2: memref<1xi32, #tpu.memory_space<smem>>, %arg3: memref<1xi32, #tpu.memory_space<smem>>) -> (i32, i32, i32) {
    %c0_i32 = arith.constant 0 : i32
    %c0_i32_0 = arith.constant 0 : i32
    %c0_i32_1 = arith.constant 0 : i32
    return %arg0, %c0_i32, %c0_i32_0 : i32, i32, i32
  }
}

</mosaic_0001>

<llo_original>
// kernel: tpu_custom_call.1
$region0: #{tpu_custom_call.1}
  #allocation0 [shape = 'u32[]', space=smem, size = 0x4, offset = 0x4, fixed_abs, tag = 'smem constant byte address 0x4 - core index']
  #allocation1 [shape = 'u32[72,128]{1,0:T(1,128)}', space=vmem, size = 0x9000, scoped, tag = 'internal scratch']
  #allocation2 [shape = 's32[1]{0}', space=sflag, size = 0x4, scoped, tag = 'scoped memory for tpu_custom_call.1']
  #allocation3 [shape = 's32[1]{0:T(128)S(6)}', space=smem, size = 0x200, scoped, tag = 'prefetched SMEM operand 0']
  #allocation4 [shape = 's32[1]{0:T(128)S(6)}', space=smem, size = 0x200, scoped, tag = 'prefetched SMEM operand 1']
  %s0 = inlined_call_operand.<no memory space> [shape: s32[1], index: 0, kind: input, shape index: {}]
  %s1 = inlined_call_operand.<no memory space> [shape: s32[1], index: 1, kind: input, shape index: {}]
  %s2 = inlined_call_operand.vmem [shape: f32[32,128], index: 2, kind: input, shape index: {}]
  %s3 = inlined_call_operand.vmem [shape: f32[32,128], index: 3, kind: input, shape index: {}]
  %s4 = inlined_call_operand.vmem [shape: f32[128,1], index: 4, kind: input, shape index: {}]
  %s5 = inlined_call_operand.vmem [shape: f32[1,128], index: 5, kind: input, shape index: {}]
  %s6 = inlined_call_operand.hbm [shape: f32[1,1,128], index: 6, kind: output, shape index: {}]
  %s7 = sld [smem:[#allocation0]]
  $region26: #{tpu_custom_call.1} parent=0
    _
  %s9 = ssub.s32 1, %s7
  %s10 = scalar_select 0, %s9, %s7
  %11 = sst [smem:[#allocation3]] %s0
  %12 = sst [smem:[#allocation4]] %s1
  $region1: #{tpu_custom_call.1} parent=0
    #allocation5 [shape = 'u8[512]{0}', space=vmem, size = 0x400, scoped, tag = 'output window, operand 0, single buffered']
    #allocation6 [shape = 's32[1]{0}', space=sflag, size = 0x4, scoped, tag = 'scoped memory for tpu_custom_call.1']
    %13 = vsyncpa [#allocation6], 0
    // Predicated region
    $region2: #{tpu_custom_call.1} parent=1 // pred_check
      _
    $region3: #{tpu_custom_call.1} parent=1 // pred_check_branch
      %15 = sbr.rel (0) target = $region5
    $region4: #{tpu_custom_call.1} parent=1 // pred_region
      %s16 = sld [smem:[#allocation3]]
      %p17 = scmp.lt.s32.totalorder %s16, 0
      %s18 = scalar_select %p17, %s16, 0
      %s19 = smul.addr %s18, 8
      %s20 = scalar_lea.vmem %s2, %s19
      %s21 = sld [smem:[#allocation3]]
    $region5: #{tpu_custom_call.1} parent=1 // pred_fallthru
      _
    // Predicated region
    $region6: #{tpu_custom_call.1} parent=1 // pred_check
      _
    $region7: #{tpu_custom_call.1} parent=1 // pred_check_branch
      %23 = sbr.rel (0) target = $region9
    $region8: #{tpu_custom_call.1} parent=1 // pred_region
      %s24 = sld [smem:[#allocation4]]
      %p25 = scmp.lt.s32.totalorder %s24, 0
      %s26 = scalar_select %p25, %s24, 0
      %s27 = smul.addr %s26, 8
      %s28 = scalar_lea.vmem %s3, %s27
      %s29 = sld [smem:[#allocation4]]
    $region9: #{tpu_custom_call.1} parent=1 // pred_fallthru
      _
    // Predicated region
    $region10: #{tpu_custom_call.1} parent=1 // pred_check
      _
    $region11: #{tpu_custom_call.1} parent=1 // pred_check_branch
      %31 = sbr.rel (0) target = $region13
    $region12: #{tpu_custom_call.1} parent=1 // pred_region
      %s32 = sld [smem:[#allocation3]]
      %s33 = smul.u32 16, %s32
      %p34 = scmp.lt.s32.totalorder %s33, 15
      %s35 = scalar_select %p34, %s33, 15
      %s36 = smul.addr %s35, 8
      %s37 = scalar_lea.vmem %s4, %s36
      %s38 = sld [smem:[#allocation3]]
      %s39 = smul.u32 16, %s38
    $region13: #{tpu_custom_call.1} parent=1 // pred_fallthru
      _
    // Predicated region
    $region14: #{tpu_custom_call.1} parent=1 // pred_check
      _
    $region15: #{tpu_custom_call.1} parent=1 // pred_check_branch
      %41 = sbr.rel (0) target = $region17
    $region16: #{tpu_custom_call.1} parent=1 // pred_region
      %s42 = sld [smem:[#allocation4]]
      %p43 = scmp.lt.s32.totalorder %s42, 0
      %s44 = scalar_select %p43, %s42, 0
      %s45 = scalar_lea.vmem %s5, %s44
      %s46 = sld [smem:[#allocation4]]
    $region17: #{tpu_custom_call.1} parent=1 // pred_fallthru
      _
    %s47 = sld [smem:[#allocation3]]
    %p48 = scmp.lt.s32.totalorder %s47, 0
    %s49 = scalar_select %p48, %s47, 0
    %s50 = smul.addr %s49, 8
    %s51 = scalar_lea.vmem %s2, %s50
    %s52 = sld [smem:[#allocation4]]
    %p53 = scmp.lt.s32.totalorder %s52, 0
    %s54 = scalar_select %p53, %s52, 0
    %s55 = smul.addr %s54, 8
    %s56 = scalar_lea.vmem %s3, %s55
    %s57 = sld [smem:[#allocation3]]
    %s58 = smul.u32 16, %s57
    %p59 = scmp.lt.s32.totalorder %s58, 15
    %s60 = scalar_select %p59, %s58, 15
    %s61 = smul.addr %s60, 8
    %s62 = scalar_lea.vmem %s4, %s61
    %s63 = sld [smem:[#allocation4]]
    %p64 = scmp.lt.s32.totalorder %s63, 0
    %s65 = scalar_select %p64, %s63, 0
    %s66 = scalar_lea.vmem %s5, %s65
    %s67 = sld [smem:[#allocation3]]
    %p68 = scmp.lt.s32.totalorder %s67, 0
    %s69 = scalar_select %p68, %s67, 0
    %s70 = smul.addr %s69, 8
    %s71 = scalar_lea.vmem %s2, %s70
    %s72 = sld [smem:[#allocation3]]
    %s73 = sld [smem:[#allocation4]]
    %p74 = scmp.lt.s32.totalorder %s73, 0
    %s75 = scalar_select %p74, %s73, 0
    %s76 = smul.addr %s75, 8
    %s77 = scalar_lea.vmem %s3, %s76
    %s78 = sld [smem:[#allocation4]]
    %s79 = sld [smem:[#allocation3]]
    %s80 = smul.u32 16, %s79
    %p81 = scmp.lt.s32.totalorder %s80, 15
    %s82 = scalar_select %p81, %s80, 15
    %s83 = smul.addr %s82, 8
    %s84 = scalar_lea.vmem %s4, %s83
    %s85 = sld [smem:[#allocation3]]
    %s86 = smul.u32 16, %s85
    %s87 = sld [smem:[#allocation4]]
    %p88 = scmp.lt.s32.totalorder %s87, 0
    %s89 = scalar_select %p88, %s87, 0
    %s90 = scalar_lea.vmem %s5, %s89
    %s91 = sld [smem:[#allocation4]]
    %s92 = sld [smem:[#allocation3]]
    %s93 = sld [smem:[#allocation4]]
    %v94 = vld [vmem:[%s71] sm:$0xff]
    %v95 = vld [vmem:[%s71 + $0x8] sm:$0xff]
    %v96 = vld [vmem:[%s71 + $0x10] sm:$0xff]
    %v97 = vld [vmem:[%s71 + $0x18] sm:$0xff]
    %v98 = vld [vmem:[%s77] sm:$0xff]
    %v99 = vld [vmem:[%s77 + $0x8] sm:$0xff]
    %v100 = vld [vmem:[%s77 + $0x10] sm:$0xff]
    %v101 = vld [vmem:[%s77 + $0x18] sm:$0xff]
    %102 = vxpose.xlu0.b32.start [1/16] %v94, 128
    %103 = vxpose.xlu0.b32.cont [2/16] %v95, 128
    %104 = vxpose.xlu0.b32.cont [3/16] %v96, 128
    %105 = vxpose.xlu0.b32.cont [4/16] %v97, 128
    %106 = vxpose.xlu0.b32.cont [5/16] 0.0, 128
    %107 = vxpose.xlu0.b32.cont [6/16] 0.0, 128
    %108 = vxpose.xlu0.b32.cont [7/16] 0.0, 128
    %109 = vxpose.xlu0.b32.cont [8/16] 0.0, 128
    %110 = vxpose.xlu0.b32.cont [9/16] 0.0, 128
    %111 = vxpose.xlu0.b32.cont [10/16] 0.0, 128
    %112 = vxpose.xlu0.b32.cont [11/16] 0.0, 128
    %113 = vxpose.xlu0.b32.cont [12/16] 0.0, 128
    %114 = vxpose.xlu0.b32.cont [13/16] 0.0, 128
    %115 = vxpose.xlu0.b32.cont [14/16] 0.0, 128
    %116 = vxpose.xlu0.b32.cont [15/16] 0.0, 128
    %117 = vxpose.xlu0.b32.end [16/16] 0.0, 128
    %v118 = vpop.trf.xlu0
    %v119 = vpop.trf.xlu0
    %v120 = vpop.trf.xlu0
    %v121 = vpop.trf.xlu0
    %v122 = vpop.trf.xlu0
    %v123 = vpop.trf.xlu0
    %v124 = vpop.trf.xlu0
    %v125 = vpop.trf.xlu0
    %v126 = vpop.trf.xlu0
    %v127 = vpop.trf.xlu0
    %v128 = vpop.trf.xlu0
    %v129 = vpop.trf.xlu0
    %v130 = vpop.trf.xlu0
    %v131 = vpop.trf.xlu0
    %v132 = vpop.trf.xlu0
    %v133 = vpop.trf.xlu0
    %vm134 = vcmask 261120
    %v136 = vsel %vm134, %v118, 0
    %v139 = vsel %vm134, %v119, 0
    %v142 = vsel %vm134, %v120, 0
    %v145 = vsel %vm134, %v121, 0
    %v148 = vsel %vm134, %v122, 0
    %v151 = vsel %vm134, %v123, 0
    %v154 = vsel %vm134, %v124, 0
    %v157 = vsel %vm134, %v125, 0
    %v160 = vsel %vm134, %v126, 0
    %v163 = vsel %vm134, %v127, 0
    %v166 = vsel %vm134, %v128, 0
    %v169 = vsel %vm134, %v129, 0
    %v172 = vsel %vm134, %v130, 0
    %v175 = vsel %vm134, %v131, 0
    %v178 = vsel %vm134, %v132, 0
    %v181 = vsel %vm134, %v133, 0
    %183 = vmatpush.msra.mxu0 0.0
    %184 = vmatpush.msra.mxu0 0.0
    %185 = vmatpush.msra.mxu0 0.0
    %186 = vmatpush.msra.mxu0 0.0
    %187 = vmatpush.msra.mxu0 0.0
    %188 = vmatpush.msra.mxu0 0.0
    %189 = vmatpush.msra.mxu0 0.0
    %190 = vmatpush.msra.mxu0 0.0
    %191 = vmatpush.msra.mxu0 0.0
    %192 = vmatpush.msra.mxu0 0.0
    %193 = vmatpush.msra.mxu0 0.0
    %194 = vmatpush.msra.mxu0 0.0
    %195 = vmatpush.msra.mxu0 %v101
    %196 = vmatpush.msra.mxu0 %v100
    %197 = vmatpush.msra.mxu0 %v99
    %198 = vmatpush.msra.mxu0 %v98
    %199 = vmatmul.f32.gmra.mxu0 %v136
    %v200 = vpop.f32.mrf.mxu0
    %v201 = vadd.f32 0.0, %v200
    %202 = vmatmul.f32.gmra.mxu0 %v139
    %v203 = vpop.f32.mrf.mxu0
    %v204 = vadd.f32 0.0, %v203
    %205 = vmatmul.f32.gmra.mxu0 %v142
    %v206 = vpop.f32.mrf.mxu0
    %v207 = vadd.f32 0.0, %v206
    %208 = vmatmul.f32.gmra.mxu0 %v145
    %v209 = vpop.f32.mrf.mxu0
    %v210 = vadd.f32 0.0, %v209
    %211 = vmatmul.f32.gmra.mxu0 %v148
    %v212 = vpop.f32.mrf.mxu0
    %v213 = vadd.f32 0.0, %v212
    %214 = vmatmul.f32.gmra.mxu0 %v151
    %v215 = vpop.f32.mrf.mxu0
    %v216 = vadd.f32 0.0, %v215
    %217 = vmatmul.f32.gmra.mxu0 %v154
    %v218 = vpop.f32.mrf.mxu0
    %v219 = vadd.f32 0.0, %v218
    %220 = vmatmul.f32.gmra.mxu0 %v157
    %v221 = vpop.f32.mrf.mxu0
    %v222 = vadd.f32 0.0, %v221
    %223 = vmatmul.f32.gmra.mxu0 %v160
    %v224 = vpop.f32.mrf.mxu0
    %v225 = vadd.f32 0.0, %v224
    %226 = vmatmul.f32.gmra.mxu0 %v163
    %v227 = vpop.f32.mrf.mxu0
    %v228 = vadd.f32 0.0, %v227
    %229 = vmatmul.f32.gmra.mxu0 %v166
    %v230 = vpop.f32.mrf.mxu0
    %v231 = vadd.f32 0.0, %v230
    %232 = vmatmul.f32.gmra.mxu0 %v169
    %v233 = vpop.f32.mrf.mxu0
    %v234 = vadd.f32 0.0, %v233
    %235 = vmatmul.f32.gmra.mxu0 %v172
    %v236 = vpop.f32.mrf.mxu0
    %v237 = vadd.f32 0.0, %v236
    %238 = vmatmul.f32.gmra.mxu0 %v175
    %v239 = vpop.f32.mrf.mxu0
    %v240 = vadd.f32 0.0, %v239
    %241 = vmatmul.f32.gmra.mxu0 %v178
    %v242 = vpop.f32.mrf.mxu0
    %v243 = vadd.f32 0.0, %v242
    %244 = vmatmul.f32.gmra.mxu0 %v181
    %v245 = vpop.f32.mrf.mxu0
    %v246 = vadd.f32 0.0, %v245
    %247 = vdwg.mxu0
    %v248 = vld [vmem:[%s84] sm:$0xff]
    %v249 = vld [vmem:[%s84 + $0x8] sm:$0xff]
    %v250 = vld [vmem:[%s84 + $0x10] sm:$0xff]
    %v251 = vld [vmem:[%s84 + $0x18] sm:$0xff]
    %v252 = vld [vmem:[%s84 + $0x20] sm:$0xff]
    %v253 = vld [vmem:[%s84 + $0x28] sm:$0xff]
    %v254 = vld [vmem:[%s84 + $0x30] sm:$0xff]
    %v255 = vld [vmem:[%s84 + $0x38] sm:$0xff]
    %v256 = vld [vmem:[%s84 + $0x40] sm:$0xff]
    %v257 = vld [vmem:[%s84 + $0x48] sm:$0xff]
    %v258 = vld [vmem:[%s84 + $0x50] sm:$0xff]
    %v259 = vld [vmem:[%s84 + $0x58] sm:$0xff]
    %v260 = vld [vmem:[%s84 + $0x60] sm:$0xff]
    %v261 = vld [vmem:[%s84 + $0x68] sm:$0xff]
    %v262 = vld [vmem:[%s84 + $0x70] sm:$0xff]
    %v263 = vld [vmem:[%s84 + $0x78] sm:$0xff]
    %v264 = vld [vmem:[%s90] sm:$0x1]
    %266 = vset.pattern.permute.xlu0 0
    %267 = vperm.xlu0 %266, %v248
    %v268 = vpop.permute.xlu0 %267
    %271 = vset.pattern.permute.xlu0 0
    %272 = vperm.xlu0 %271, %v249
    %v273 = vpop.permute.xlu0 %272
    %276 = vset.pattern.permute.xlu0 0
    %277 = vperm.xlu0 %276, %v250
    %v278 = vpop.permute.xlu0 %277
    %281 = vset.pattern.permute.xlu0 0
    %282 = vperm.xlu0 %281, %v251
    %v283 = vpop.permute.xlu0 %282
    %286 = vset.pattern.permute.xlu0 0
    %287 = vperm.xlu0 %286, %v252
    %v288 = vpop.permute.xlu0 %287
    %291 = vset.pattern.permute.xlu0 0
    %292 = vperm.xlu0 %291, %v253
    %v293 = vpop.permute.xlu0 %292
    %296 = vset.pattern.permute.xlu0 0
    %297 = vperm.xlu0 %296, %v254
    %v298 = vpop.permute.xlu0 %297
    %301 = vset.pattern.permute.xlu0 0
    %302 = vperm.xlu0 %301, %v255
    %v303 = vpop.permute.xlu0 %302
    %306 = vset.pattern.permute.xlu0 0
    %307 = vperm.xlu0 %306, %v256
    %v308 = vpop.permute.xlu0 %307
    %311 = vset.pattern.permute.xlu0 0
    %312 = vperm.xlu0 %311, %v257
    %v313 = vpop.permute.xlu0 %312
    %316 = vset.pattern.permute.xlu0 0
    %317 = vperm.xlu0 %316, %v258
    %v318 = vpop.permute.xlu0 %317
    %321 = vset.pattern.permute.xlu0 0
    %322 = vperm.xlu0 %321, %v259
    %v323 = vpop.permute.xlu0 %322
    %326 = vset.pattern.permute.xlu0 0
    %327 = vperm.xlu0 %326, %v260
    %v328 = vpop.permute.xlu0 %327
    %331 = vset.pattern.permute.xlu0 0
    %332 = vperm.xlu0 %331, %v261
    %v333 = vpop.permute.xlu0 %332
    %336 = vset.pattern.permute.xlu0 0
    %337 = vperm.xlu0 %336, %v262
    %v338 = vpop.permute.xlu0 %337
    %341 = vset.pattern.permute.xlu0 0
    %342 = vperm.xlu0 %341, %v263
    %v343 = vpop.permute.xlu0 %342
    %v346 = vperm.slane %v264, 0
    %v348 = vmul.f32 %v268, %v346
    %v349 = vmul.f32 %v273, %v346
    %v350 = vmul.f32 %v278, %v346
    %v351 = vmul.f32 %v283, %v346
    %v352 = vmul.f32 %v288, %v346
    %v353 = vmul.f32 %v293, %v346
    %v354 = vmul.f32 %v298, %v346
    %v355 = vmul.f32 %v303, %v346
    %v356 = vmul.f32 %v308, %v346
    %v357 = vmul.f32 %v313, %v346
    %v358 = vmul.f32 %v318, %v346
    %v359 = vmul.f32 %v323, %v346
    %v360 = vmul.f32 %v328, %v346
    %v361 = vmul.f32 %v333, %v346
    %v362 = vmul.f32 %v338, %v346
    %v363 = vmul.f32 %v343, %v346
    %v364 = vadd.f32 %v348, 1e-06
    %v365 = vadd.f32 %v349, 1e-06
    %v366 = vadd.f32 %v350, 1e-06
    %v367 = vadd.f32 %v351, 1e-06
    %v368 = vadd.f32 %v352, 1e-06
    %v369 = vadd.f32 %v353, 1e-06
    %v370 = vadd.f32 %v354, 1e-06
    %v371 = vadd.f32 %v355, 1e-06
    %v372 = vadd.f32 %v356, 1e-06
    %v373 = vadd.f32 %v357, 1e-06
    %v374 = vadd.f32 %v358, 1e-06
    %v375 = vadd.f32 %v359, 1e-06
    %v376 = vadd.f32 %v360, 1e-06
    %v377 = vadd.f32 %v361, 1e-06
    %v378 = vadd.f32 %v362, 1e-06
    %v379 = vadd.f32 %v363, 1e-06
    %v380 = vlaneseq
    %v381 = vshrl.u32 %v380, 7
    %v382 = vadd.s32 %v381, 8
    %v383 = vadd.s32 %v381, 16
    %v384 = vadd.s32 %v381, 24
    %v385 = vadd.s32 %v381, 32
    %v386 = vadd.s32 %v381, 40
    %v387 = vadd.s32 %v381, 48
    %v388 = vadd.s32 %v381, 56
    %v389 = vadd.s32 %v381, 64
    %v390 = vadd.s32 %v381, 72
    %v391 = vadd.s32 %v381, 80
    %v392 = vadd.s32 %v381, 88
    %v393 = vadd.s32 %v381, 96
    %v394 = vadd.s32 %v381, 104
    %v395 = vadd.s32 %v381, 112
    %v396 = vadd.s32 %v381, 120
    %s397 = smul.u32 %s92, 128
    %v398 = vstv %s397
    %v399 = vadd.s32 %v381, %v398
    %v400 = vadd.s32 %v382, %v398
    %v401 = vadd.s32 %v383, %v398
    %v402 = vadd.s32 %v384, %v398
    %v403 = vadd.s32 %v385, %v398
    %v404 = vadd.s32 %v386, %v398
    %v405 = vadd.s32 %v387, %v398
    %v406 = vadd.s32 %v388, %v398
    %v407 = vadd.s32 %v389, %v398
    %v408 = vadd.s32 %v390, %v398
    %v409 = vadd.s32 %v391, %v398
    %v410 = vadd.s32 %v392, %v398
    %v411 = vadd.s32 %v393, %v398
    %v412 = vadd.s32 %v394, %v398
    %v413 = vadd.s32 %v395, %v398
    %v414 = vadd.s32 %v396, %v398
    %v415 = vlaneseq
    %v416 = vand.u32 %v415, 127
    %s417 = smul.u32 %s93, 128
    %v418 = vstv %s417
    %v419 = vadd.s32 %v416, %v418
    %vm420 = vcmp.lt.s32.totalorder %v399, 16
    %vm421 = vcmp.lt.s32.totalorder %v400, 16
    %vm422 = vcmp.lt.s32.totalorder %v401, 16
    %vm423 = vcmp.lt.s32.totalorder %v402, 16
    %vm424 = vcmp.lt.s32.totalorder %v403, 16
    %vm425 = vcmp.lt.s32.totalorder %v404, 16
    %vm426 = vcmp.lt.s32.totalorder %v405, 16
    %vm427 = vcmp.lt.s32.totalorder %v406, 16
    %vm428 = vcmp.lt.s32.totalorder %v407, 16
    %vm429 = vcmp.lt.s32.totalorder %v408, 16
    %vm430 = vcmp.lt.s32.totalorder %v409, 16
    %vm431 = vcmp.lt.s32.totalorder %v410, 16
    %vm432 = vcmp.lt.s32.totalorder %v411, 16
    %vm433 = vcmp.lt.s32.totalorder %v412, 16
    %vm434 = vcmp.lt.s32.totalorder %v413, 16
    %vm435 = vcmp.lt.s32.totalorder %v414, 16
    %vm436 = vcmp.lt.s32.totalorder %v419, 16
    %vm437 = vmand %vm420, %vm436
    %vm438 = vmand %vm421, %vm436
    %vm439 = vmand %vm422, %vm436
    %vm440 = vmand %vm423, %vm436
    %vm441 = vmand %vm424, %vm436
    %vm442 = vmand %vm425, %vm436
    %vm443 = vmand %vm426, %vm436
    %vm444 = vmand %vm427, %vm436
    %vm445 = vmand %vm428, %vm436
    %vm446 = vmand %vm429, %vm436
    %vm447 = vmand %vm430, %vm436
    %vm448 = vmand %vm431, %vm436
    %vm449 = vmand %vm432, %vm436
    %vm450 = vmand %vm433, %vm436
    %vm451 = vmand %vm434, %vm436
    %vm452 = vmand %vm435, %vm436
    %v453 = vrcp.pop %v364
    %v454 = vmul.f32 %v364, %v453
    %v455 = vsub.f32 1.0, %v454
    %v456 = vmul.f32 %v453, %v455
    %v457 = vadd.f32 %v453, %v456
    %vm458 = vweird.f32 %v364
    %vm459 = vweird.f32 %v453
    %vm460 = vmor %vm458, %vm459
    %v461 = vsel %vm460, %v453, %v457
    %v462 = vand.u32 2147483647, %v364
    %vm463 = vcmp.eq.f32.partialorder %v462, 8.507059e+37
    %v464 = vand.u32 %v364, 2147483648
    %v465 = vor.u32 1.1754944e-38, %v464
    %v466 = vsel %vm463, %v465, %v461
    %v467 = vrcp.pop %v365
    %v468 = vmul.f32 %v365, %v467
    %v469 = vsub.f32 1.0, %v468
    %v470 = vmul.f32 %v467, %v469
    %v471 = vadd.f32 %v467, %v470
    %vm472 = vweird.f32 %v365
    %vm473 = vweird.f32 %v467
    %vm474 = vmor %vm472, %vm473
    %v475 = vsel %vm474, %v467, %v471
    %v476 = vand.u32 2147483647, %v365
    %vm477 = vcmp.eq.f32.partialorder %v476, 8.507059e+37
    %v478 = vand.u32 %v365, 2147483648
    %v479 = vor.u32 1.1754944e-38, %v478
    %v480 = vsel %vm477, %v479, %v475
    %v481 = vrcp.pop %v366
    %v482 = vmul.f32 %v366, %v481
    %v483 = vsub.f32 1.0, %v482
    %v484 = vmul.f32 %v481, %v483
    %v485 = vadd.f32 %v481, %v484
    %vm486 = vweird.f32 %v366
    %vm487 = vweird.f32 %v481
    %vm488 = vmor %vm486, %vm487
    %v489 = vsel %vm488, %v481, %v485
    %v490 = vand.u32 2147483647, %v366
    %vm491 = vcmp.eq.f32.partialorder %v490, 8.507059e+37
    %v492 = vand.u32 %v366, 2147483648
    %v493 = vor.u32 1.1754944e-38, %v492
    %v494 = vsel %vm491, %v493, %v489
    %v495 = vrcp.pop %v367
    %v496 = vmul.f32 %v367, %v495
    %v497 = vsub.f32 1.0, %v496
    %v498 = vmul.f32 %v495, %v497
    %v499 = vadd.f32 %v495, %v498
    %vm500 = vweird.f32 %v367
    %vm501 = vweird.f32 %v495
    %vm502 = vmor %vm500, %vm501
    %v503 = vsel %vm502, %v495, %v499
    %v504 = vand.u32 2147483647, %v367
    %vm505 = vcmp.eq.f32.partialorder %v504, 8.507059e+37
    %v506 = vand.u32 %v367, 2147483648
    %v507 = vor.u32 1.1754944e-38, %v506
    %v508 = vsel %vm505, %v507, %v503
    %v509 = vrcp.pop %v368
    %v510 = vmul.f32 %v368, %v509
    %v511 = vsub.f32 1.0, %v510
    %v512 = vmul.f32 %v509, %v511
    %v513 = vadd.f32 %v509, %v512
    %vm514 = vweird.f32 %v368
    %vm515 = vweird.f32 %v509
    %vm516 = vmor %vm514, %vm515
    %v517 = vsel %vm516, %v509, %v513
    %v518 = vand.u32 2147483647, %v368
    %vm519 = vcmp.eq.f32.partialorder %v518, 8.507059e+37
    %v520 = vand.u32 %v368, 2147483648
    %v521 = vor.u32 1.1754944e-38, %v520
    %v522 = vsel %vm519, %v521, %v517
    %v523 = vrcp.pop %v369
    %v524 = vmul.f32 %v369, %v523
    %v525 = vsub.f32 1.0, %v524
    %v526 = vmul.f32 %v523, %v525
    %v527 = vadd.f32 %v523, %v526
    %vm528 = vweird.f32 %v369
    %vm529 = vweird.f32 %v523
    %vm530 = vmor %vm528, %vm529
    %v531 = vsel %vm530, %v523, %v527
    %v532 = vand.u32 2147483647, %v369
    %vm533 = vcmp.eq.f32.partialorder %v532, 8.507059e+37
    %v534 = vand.u32 %v369, 2147483648
    %v535 = vor.u32 1.1754944e-38, %v534
    %v536 = vsel %vm533, %v535, %v531
    %v537 = vrcp.pop %v370
    %v538 = vmul.f32 %v370, %v537
    %v539 = vsub.f32 1.0, %v538
    %v540 = vmul.f32 %v537, %v539
    %v541 = vadd.f32 %v537, %v540
    %vm542 = vweird.f32 %v370
    %vm543 = vweird.f32 %v537
    %vm544 = vmor %vm542, %vm543
    %v545 = vsel %vm544, %v537, %v541
    %v546 = vand.u32 2147483647, %v370
    %vm547 = vcmp.eq.f32.partialorder %v546, 8.507059e+37
    %v548 = vand.u32 %v370, 2147483648
    %v549 = vor.u32 1.1754944e-38, %v548
    %v550 = vsel %vm547, %v549, %v545
    %v551 = vrcp.pop %v371
    %v552 = vmul.f32 %v371, %v551
    %v553 = vsub.f32 1.0, %v552
    %v554 = vmul.f32 %v551, %v553
    %v555 = vadd.f32 %v551, %v554
    %vm556 = vweird.f32 %v371
    %vm557 = vweird.f32 %v551
    %vm558 = vmor %vm556, %vm557
    %v559 = vsel %vm558, %v551, %v555
    %v560 = vand.u32 2147483647, %v371
    %vm561 = vcmp.eq.f32.partialorder %v560, 8.507059e+37
    %v562 = vand.u32 %v371, 2147483648
    %v563 = vor.u32 1.1754944e-38, %v562
    %v564 = vsel %vm561, %v563, %v559
    %v565 = vrcp.pop %v372
    %v566 = vmul.f32 %v372, %v565
    %v567 = vsub.f32 1.0, %v566
    %v568 = vmul.f32 %v565, %v567
    %v569 = vadd.f32 %v565, %v568
    %vm570 = vweird.f32 %v372
    %vm571 = vweird.f32 %v565
    %vm572 = vmor %vm570, %vm571
    %v573 = vsel %vm572, %v565, %v569
    %v574 = vand.u32 2147483647, %v372
    %vm575 = vcmp.eq.f32.partialorder %v574, 8.507059e+37
    %v576 = vand.u32 %v372, 2147483648
    %v577 = vor.u32 1.1754944e-38, %v576
    %v578 = vsel %vm575, %v577, %v573
    %v579 = vrcp.pop %v373
    %v580 = vmul.f32 %v373, %v579
    %v581 = vsub.f32 1.0, %v580
    %v582 = vmul.f32 %v579, %v581
    %v583 = vadd.f32 %v579, %v582
    %vm584 = vweird.f32 %v373
    %vm585 = vweird.f32 %v579
    %vm586 = vmor %vm584, %vm585
    %v587 = vsel %vm586, %v579, %v583
    %v588 = vand.u32 2147483647, %v373
    %vm589 = vcmp.eq.f32.partialorder %v588, 8.507059e+37
    %v590 = vand.u32 %v373, 2147483648
    %v591 = vor.u32 1.1754944e-38, %v590
    %v592 = vsel %vm589, %v591, %v587
    %v593 = vrcp.pop %v374
    %v594 = vmul.f32 %v374, %v593
    %v595 = vsub.f32 1.0, %v594
    %v596 = vmul.f32 %v593, %v595
    %v597 = vadd.f32 %v593, %v596
    %vm598 = vweird.f32 %v374
    %vm599 = vweird.f32 %v593
    %vm600 = vmor %vm598, %vm599
    %v601 = vsel %vm600, %v593, %v597
    %v602 = vand.u32 2147483647, %v374
    %vm603 = vcmp.eq.f32.partialorder %v602, 8.507059e+37
    %v604 = vand.u32 %v374, 2147483648
    %v605 = vor.u32 1.1754944e-38, %v604
    %v606 = vsel %vm603, %v605, %v601
    %v607 = vrcp.pop %v375
    %v608 = vmul.f32 %v375, %v607
    %v609 = vsub.f32 1.0, %v608
    %v610 = vmul.f32 %v607, %v609
    %v611 = vadd.f32 %v607, %v610
    %vm612 = vweird.f32 %v375
    %vm613 = vweird.f32 %v607
    %vm614 = vmor %vm612, %vm613
    %v615 = vsel %vm614, %v607, %v611
    %v616 = vand.u32 2147483647, %v375
    %vm617 = vcmp.eq.f32.partialorder %v616, 8.507059e+37
    %v618 = vand.u32 %v375, 2147483648
    %v619 = vor.u32 1.1754944e-38, %v618
    %v620 = vsel %vm617, %v619, %v615
    %v621 = vrcp.pop %v376
    %v622 = vmul.f32 %v376, %v621
    %v623 = vsub.f32 1.0, %v622
    %v624 = vmul.f32 %v621, %v623
    %v625 = vadd.f32 %v621, %v624
    %vm626 = vweird.f32 %v376
    %vm627 = vweird.f32 %v621
    %vm628 = vmor %vm626, %vm627
    %v629 = vsel %vm628, %v621, %v625
    %v630 = vand.u32 2147483647, %v376
    %vm631 = vcmp.eq.f32.partialorder %v630, 8.507059e+37
    %v632 = vand.u32 %v376, 2147483648
    %v633 = vor.u32 1.1754944e-38, %v632
    %v634 = vsel %vm631, %v633, %v629
    %v635 = vrcp.pop %v377
    %v636 = vmul.f32 %v377, %v635
    %v637 = vsub.f32 1.0, %v636
    %v638 = vmul.f32 %v635, %v637
    %v639 = vadd.f32 %v635, %v638
    %vm640 = vweird.f32 %v377
    %vm641 = vweird.f32 %v635
    %vm642 = vmor %vm640, %vm641
    %v643 = vsel %vm642, %v635, %v639
    %v644 = vand.u32 2147483647, %v377
    %vm645 = vcmp.eq.f32.partialorder %v644, 8.507059e+37
    %v646 = vand.u32 %v377, 2147483648
    %v647 = vor.u32 1.1754944e-38, %v646
    %v648 = vsel %vm645, %v647, %v643
    %v649 = vrcp.pop %v378
    %v650 = vmul.f32 %v378, %v649
    %v651 = vsub.f32 1.0, %v650
    %v652 = vmul.f32 %v649, %v651
    %v653 = vadd.f32 %v649, %v652
    %vm654 = vweird.f32 %v378
    %vm655 = vweird.f32 %v649
    %vm656 = vmor %vm654, %vm655
    %v657 = vsel %vm656, %v649, %v653
    %v658 = vand.u32 2147483647, %v378
    %vm659 = vcmp.eq.f32.partialorder %v658, 8.507059e+37
    %v660 = vand.u32 %v378, 2147483648
    %v661 = vor.u32 1.1754944e-38, %v660
    %v662 = vsel %vm659, %v661, %v657
    %v663 = vrcp.pop %v379
    %v664 = vmul.f32 %v379, %v663
    %v665 = vsub.f32 1.0, %v664
    %v666 = vmul.f32 %v663, %v665
    %v667 = vadd.f32 %v663, %v666
    %vm668 = vweird.f32 %v379
    %vm669 = vweird.f32 %v663
    %vm670 = vmor %vm668, %vm669
    %v671 = vsel %vm670, %v663, %v667
    %v672 = vand.u32 2147483647, %v379
    %vm673 = vcmp.eq.f32.partialorder %v672, 8.507059e+37
    %v674 = vand.u32 %v379, 2147483648
    %v675 = vor.u32 1.1754944e-38, %v674
    %v676 = vsel %vm673, %v675, %v671
    %v677 = vmul.f32 %v201, %v466
    %v678 = vmul.f32 %v204, %v480
    %v679 = vmul.f32 %v207, %v494
    %v680 = vmul.f32 %v210, %v508
    %v681 = vmul.f32 %v213, %v522
    %v682 = vmul.f32 %v216, %v536
    %v683 = vmul.f32 %v219, %v550
    %v684 = vmul.f32 %v222, %v564
    %v685 = vmul.f32 %v225, %v578
    %v686 = vmul.f32 %v228, %v592
    %v687 = vmul.f32 %v231, %v606
    %v688 = vmul.f32 %v234, %v620
    %v689 = vmul.f32 %v237, %v634
    %v690 = vmul.f32 %v240, %v648
    %v691 = vmul.f32 %v243, %v662
    %v692 = vmul.f32 %v246, %v676
    %v693 = vmul.f32 %v677, 2.0
    %v694 = vmul.f32 %v678, 2.0
    %v695 = vmul.f32 %v679, 2.0
    %v696 = vmul.f32 %v680, 2.0
    %v697 = vmul.f32 %v681, 2.0
    %v698 = vmul.f32 %v682, 2.0
    %v699 = vmul.f32 %v683, 2.0
    %v700 = vmul.f32 %v684, 2.0
    %v701 = vmul.f32 %v685, 2.0
    %v702 = vmul.f32 %v686, 2.0
    %v703 = vmul.f32 %v687, 2.0
    %v704 = vmul.f32 %v688, 2.0
    %v705 = vmul.f32 %v689, 2.0
    %v706 = vmul.f32 %v690, 2.0
    %v707 = vmul.f32 %v691, 2.0
    %v708 = vmul.f32 %v692, 2.0
    %v709 = vsub.f32 2.0, %v693
    %v710 = vsub.f32 2.0, %v694
    %v711 = vsub.f32 2.0, %v695
    %v712 = vsub.f32 2.0, %v696
    %v713 = vsub.f32 2.0, %v697
    %v714 = vsub.f32 2.0, %v698
    %v715 = vsub.f32 2.0, %v699
    %v716 = vsub.f32 2.0, %v700
    %v717 = vsub.f32 2.0, %v701
    %v718 = vsub.f32 2.0, %v702
    %v719 = vsub.f32 2.0, %v703
    %v720 = vsub.f32 2.0, %v704
    %v721 = vsub.f32 2.0, %v705
    %v722 = vsub.f32 2.0, %v706
    %v723 = vsub.f32 2.0, %v707
    %v724 = vsub.f32 2.0, %v708
    %v725 = vlog2.pop %v709
    %v726 = vmul.f32 %v725, 0.6931472
    %v727 = vlog2.pop %v710
    %v728 = vmul.f32 %v727, 0.6931472
    %v729 = vlog2.pop %v711
    %v730 = vmul.f32 %v729, 0.6931472
    %v731 = vlog2.pop %v712
    %v732 = vmul.f32 %v731, 0.6931472
    %v733 = vlog2.pop %v713
    %v734 = vmul.f32 %v733, 0.6931472
    %v735 = vlog2.pop %v714
    %v736 = vmul.f32 %v735, 0.6931472
    %v737 = vlog2.pop %v715
    %v738 = vmul.f32 %v737, 0.6931472
    %v739 = vlog2.pop %v716
    %v740 = vmul.f32 %v739, 0.6931472
    %v741 = vlog2.pop %v717
    %v742 = vmul.f32 %v741, 0.6931472
    %v743 = vlog2.pop %v718
    %v744 = vmul.f32 %v743, 0.6931472
    %v745 = vlog2.pop %v719
    %v746 = vmul.f32 %v745, 0.6931472
    %v747 = vlog2.pop %v720
    %v748 = vmul.f32 %v747, 0.6931472
    %v749 = vlog2.pop %v721
    %v750 = vmul.f32 %v749, 0.6931472
    %v751 = vlog2.pop %v722
    %v752 = vmul.f32 %v751, 0.6931472
    %v753 = vlog2.pop %v723
    %v754 = vmul.f32 %v753, 0.6931472
    %v755 = vlog2.pop %v724
    %v756 = vmul.f32 %v755, 0.6931472
    %v757 = vsub.f32 0.0, %v726
    %v758 = vsub.f32 0.0, %v728
    %v759 = vsub.f32 0.0, %v730
    %v760 = vsub.f32 0.0, %v732
    %v761 = vsub.f32 0.0, %v734
    %v762 = vsub.f32 0.0, %v736
    %v763 = vsub.f32 0.0, %v738
    %v764 = vsub.f32 0.0, %v740
    %v765 = vsub.f32 0.0, %v742
    %v766 = vsub.f32 0.0, %v744
    %v767 = vsub.f32 0.0, %v746
    %v768 = vsub.f32 0.0, %v748
    %v769 = vsub.f32 0.0, %v750
    %v770 = vsub.f32 0.0, %v752
    %v771 = vsub.f32 0.0, %v754
    %v772 = vsub.f32 0.0, %v756
    %v773 = vsub.f32 0.0, %v677
    %v774 = vsub.f32 0.0, %v678
    %v775 = vsub.f32 0.0, %v679
    %v776 = vsub.f32 0.0, %v680
    %v777 = vsub.f32 0.0, %v681
    %v778 = vsub.f32 0.0, %v682
    %v779 = vsub.f32 0.0, %v683
    %v780 = vsub.f32 0.0, %v684
    %v781 = vsub.f32 0.0, %v685
    %v782 = vsub.f32 0.0, %v686
    %v783 = vsub.f32 0.0, %v687
    %v784 = vsub.f32 0.0, %v688
    %v785 = vsub.f32 0.0, %v689
    %v786 = vsub.f32 0.0, %v690
    %v787 = vsub.f32 0.0, %v691
    %v788 = vsub.f32 0.0, %v692
    %v789 = vmul.f32 %v773, 2.0
    %v790 = vmul.f32 %v774, 2.0
    %v791 = vmul.f32 %v775, 2.0
    %v792 = vmul.f32 %v776, 2.0
    %v793 = vmul.f32 %v777, 2.0
    %v794 = vmul.f32 %v778, 2.0
    %v795 = vmul.f32 %v779, 2.0
    %v796 = vmul.f32 %v780, 2.0
    %v797 = vmul.f32 %v781, 2.0
    %v798 = vmul.f32 %v782, 2.0
    %v799 = vmul.f32 %v783, 2.0
    %v800 = vmul.f32 %v784, 2.0
    %v801 = vmul.f32 %v785, 2.0
    %v802 = vmul.f32 %v786, 2.0
    %v803 = vmul.f32 %v787, 2.0
    %v804 = vmul.f32 %v788, 2.0
    %v805 = vsub.f32 2.0, %v789
    %v806 = vsub.f32 2.0, %v790
    %v807 = vsub.f32 2.0, %v791
    %v808 = vsub.f32 2.0, %v792
    %v809 = vsub.f32 2.0, %v793
    %v810 = vsub.f32 2.0, %v794
    %v811 = vsub.f32 2.0, %v795
    %v812 = vsub.f32 2.0, %v796
    %v813 = vsub.f32 2.0, %v797
    %v814 = vsub.f32 2.0, %v798
    %v815 = vsub.f32 2.0, %v799
    %v816 = vsub.f32 2.0, %v800
    %v817 = vsub.f32 2.0, %v801
    %v818 = vsub.f32 2.0, %v802
    %v819 = vsub.f32 2.0, %v803
    %v820 = vsub.f32 2.0, %v804
    %v821 = vlog2.pop %v805
    %v822 = vmul.f32 %v821, 0.6931472
    %v823 = vlog2.pop %v806
    %v824 = vmul.f32 %v823, 0.6931472
    %v825 = vlog2.pop %v807
    %v826 = vmul.f32 %v825, 0.6931472
    %v827 = vlog2.pop %v808
    %v828 = vmul.f32 %v827, 0.6931472
    %v829 = vlog2.pop %v809
    %v830 = vmul.f32 %v829, 0.6931472
    %v831 = vlog2.pop %v810
    %v832 = vmul.f32 %v831, 0.6931472
    %v833 = vlog2.pop %v811
    %v834 = vmul.f32 %v833, 0.6931472
    %v835 = vlog2.pop %v812
    %v836 = vmul.f32 %v835, 0.6931472
    %v837 = vlog2.pop %v813
    %v838 = vmul.f32 %v837, 0.6931472
    %v839 = vlog2.pop %v814
    %v840 = vmul.f32 %v839, 0.6931472
    %v841 = vlog2.pop %v815
    %v842 = vmul.f32 %v841, 0.6931472
    %v843 = vlog2.pop %v816
    %v844 = vmul.f32 %v843, 0.6931472
    %v845 = vlog2.pop %v817
    %v846 = vmul.f32 %v845, 0.6931472
    %v847 = vlog2.pop %v818
    %v848 = vmul.f32 %v847, 0.6931472
    %v849 = vlog2.pop %v819
    %v850 = vmul.f32 %v849, 0.6931472
    %v851 = vlog2.pop %v820
    %v852 = vmul.f32 %v851, 0.6931472
    %v853 = vsub.f32 0.0, %v822
    %v854 = vsub.f32 0.0, %v824
    %v855 = vsub.f32 0.0, %v826
    %v856 = vsub.f32 0.0, %v828
    %v857 = vsub.f32 0.0, %v830
    %v858 = vsub.f32 0.0, %v832
    %v859 = vsub.f32 0.0, %v834
    %v860 = vsub.f32 0.0, %v836
    %v861 = vsub.f32 0.0, %v838
    %v862 = vsub.f32 0.0, %v840
    %v863 = vsub.f32 0.0, %v842
    %v864 = vsub.f32 0.0, %v844
    %v865 = vsub.f32 0.0, %v846
    %v866 = vsub.f32 0.0, %v848
    %v867 = vsub.f32 0.0, %v850
    %v868 = vsub.f32 0.0, %v852
    %v869 = vsub.s32 %v399, %v419
    %v870 = vsub.s32 %v400, %v419
    %v871 = vsub.s32 %v401, %v419
    %v872 = vsub.s32 %v402, %v419
    %v873 = vsub.s32 %v403, %v419
    %v874 = vsub.s32 %v404, %v419
    %v875 = vsub.s32 %v405, %v419
    %v876 = vsub.s32 %v406, %v419
    %v877 = vsub.s32 %v407, %v419
    %v878 = vsub.s32 %v408, %v419
    %v879 = vsub.s32 %v409, %v419
    %v880 = vsub.s32 %v410, %v419
    %v881 = vsub.s32 %v411, %v419
    %v882 = vsub.s32 %v412, %v419
    %v883 = vsub.s32 %v413, %v419
    %v884 = vsub.s32 %v414, %v419
    %vm885 = vcmp.ge.s32.totalorder %v869, 2
    %vm886 = vcmp.ge.s32.totalorder %v870, 2
    %vm887 = vcmp.ge.s32.totalorder %v871, 2
    %vm888 = vcmp.ge.s32.totalorder %v872, 2
    %vm889 = vcmp.ge.s32.totalorder %v873, 2
    %vm890 = vcmp.ge.s32.totalorder %v874, 2
    %vm891 = vcmp.ge.s32.totalorder %v875, 2
    %vm892 = vcmp.ge.s32.totalorder %v876, 2
    %vm893 = vcmp.ge.s32.totalorder %v877, 2
    %vm894 = vcmp.ge.s32.totalorder %v878, 2
    %vm895 = vcmp.ge.s32.totalorder %v879, 2
    %vm896 = vcmp.ge.s32.totalorder %v880, 2
    %vm897 = vcmp.ge.s32.totalorder %v881, 2
    %vm898 = vcmp.ge.s32.totalorder %v882, 2
    %vm899 = vcmp.ge.s32.totalorder %v883, 2
    %vm900 = vcmp.ge.s32.totalorder %v884, 2
    %vm901 = vmand %vm437, %vm885
    %vm902 = vmand %vm438, %vm886
    %vm903 = vmand %vm439, %vm887
    %vm904 = vmand %vm440, %vm888
    %vm905 = vmand %vm441, %vm889
    %vm906 = vmand %vm442, %vm890
    %vm907 = vmand %vm443, %vm891
    %vm908 = vmand %vm444, %vm892
    %vm909 = vmand %vm445, %vm893
    %vm910 = vmand %vm446, %vm894
    %vm911 = vmand %vm447, %vm895
    %vm912 = vmand %vm448, %vm896
    %vm913 = vmand %vm449, %vm897
    %vm914 = vmand %vm450, %vm898
    %vm915 = vmand %vm451, %vm899
    %vm916 = vmand %vm452, %vm900
    %vm917 = vcmp.ge.s32.totalorder %v399, %v419
    %vm918 = vcmp.ge.s32.totalorder %v400, %v419
    %vm919 = vcmp.ge.s32.totalorder %v401, %v419
    %vm920 = vcmp.ge.s32.totalorder %v402, %v419
    %vm921 = vcmp.ge.s32.totalorder %v403, %v419
    %vm922 = vcmp.ge.s32.totalorder %v404, %v419
    %vm923 = vcmp.ge.s32.totalorder %v405, %v419
    %vm924 = vcmp.ge.s32.totalorder %v406, %v419
    %vm925 = vcmp.ge.s32.totalorder %v407, %v419
    %vm926 = vcmp.ge.s32.totalorder %v408, %v419
    %vm927 = vcmp.ge.s32.totalorder %v409, %v419
    %vm928 = vcmp.ge.s32.totalorder %v410, %v419
    %vm929 = vcmp.ge.s32.totalorder %v411, %v419
    %vm930 = vcmp.ge.s32.totalorder %v412, %v419
    %vm931 = vcmp.ge.s32.totalorder %v413, %v419
    %vm932 = vcmp.ge.s32.totalorder %v414, %v419
    %vm933 = vmand %vm437, %vm917
    %vm934 = vmand %vm438, %vm918
    %vm935 = vmand %vm439, %vm919
    %vm936 = vmand %vm440, %vm920
    %vm937 = vmand %vm441, %vm921
    %vm938 = vmand %vm442, %vm922
    %vm939 = vmand %vm443, %vm923
    %vm940 = vmand %vm444, %vm924
    %vm941 = vmand %vm445, %vm925
    %vm942 = vmand %vm446, %vm926
    %vm943 = vmand %vm447, %vm927
    %vm944 = vmand %vm448, %vm928
    %vm945 = vmand %vm449, %vm929
    %vm946 = vmand %vm450, %vm930
    %vm947 = vmand %vm451, %vm931
    %vm948 = vmand %vm452, %vm932
    %vm949 = vcmp.eq.s32.totalorder %v399, %v419
    %vm950 = vcmp.eq.s32.totalorder %v400, %v419
    %vm951 = vcmp.eq.s32.totalorder %v401, %v419
    %vm952 = vcmp.eq.s32.totalorder %v402, %v419
    %vm953 = vcmp.eq.s32.totalorder %v403, %v419
    %vm954 = vcmp.eq.s32.totalorder %v404, %v419
    %vm955 = vcmp.eq.s32.totalorder %v405, %v419
    %vm956 = vcmp.eq.s32.totalorder %v406, %v419
    %vm957 = vcmp.eq.s32.totalorder %v407, %v419
    %vm958 = vcmp.eq.s32.totalorder %v408, %v419
    %vm959 = vcmp.eq.s32.totalorder %v409, %v419
    %vm960 = vcmp.eq.s32.totalorder %v410, %v419
    %vm961 = vcmp.eq.s32.totalorder %v411, %v419
    %vm962 = vcmp.eq.s32.totalorder %v412, %v419
    %vm963 = vcmp.eq.s32.totalorder %v413, %v419
    %vm964 = vcmp.eq.s32.totalorder %v414, %v419
    %v965 = vsel %vm949, 1, 0
    %v966 = vsel %vm950, 1, 0
    %v967 = vsel %vm951, 1, 0
    %v968 = vsel %vm952, 1, 0
    %v969 = vsel %vm953, 1, 0
    %v970 = vsel %vm954, 1, 0
    %v971 = vsel %vm955, 1, 0
    %v972 = vsel %vm956, 1, 0
    %v973 = vsel %vm957, 1, 0
    %v974 = vsel %vm958, 1, 0
    %v975 = vsel %vm959, 1, 0
    %v976 = vsel %vm960, 1, 0
    %v977 = vsel %vm961, 1, 0
    %v978 = vsel %vm962, 1, 0
    %v979 = vsel %vm963, 1, 0
    %v980 = vsel %vm964, 1, 0
    %v981 = vcvt.s32.f32 %v965
    %v982 = vcvt.s32.f32 %v966
    %v983 = vcvt.s32.f32 %v967
    %v984 = vcvt.s32.f32 %v968
    %v985 = vcvt.s32.f32 %v969
    %v986 = vcvt.s32.f32 %v970
    %v987 = vcvt.s32.f32 %v971
    %v988 = vcvt.s32.f32 %v972
    %v989 = vcvt.s32.f32 %v973
    %v990 = vcvt.s32.f32 %v974
    %v991 = vcvt.s32.f32 %v975
    %v992 = vcvt.s32.f32 %v976
    %v993 = vcvt.s32.f32 %v977
    %v994 = vcvt.s32.f32 %v978
    %v995 = vcvt.s32.f32 %v979
    %v996 = vcvt.s32.f32 %v980
    %v997 = vsub.f32 2.0, %v981
    %v998 = vsub.f32 2.0, %v982
    %v999 = vsub.f32 2.0, %v983
    %v1000 = vsub.f32 2.0, %v984
    %v1001 = vsub.f32 2.0, %v985
    %v1002 = vsub.f32 2.0, %v986
    %v1003 = vsub.f32 2.0, %v987
    %v1004 = vsub.f32 2.0, %v988
    %v1005 = vsub.f32 2.0, %v989
    %v1006 = vsub.f32 2.0, %v990
    %v1007 = vsub.f32 2.0, %v991
    %v1008 = vsub.f32 2.0, %v992
    %v1009 = vsub.f32 2.0, %v993
    %v1010 = vsub.f32 2.0, %v994
    %v1011 = vsub.f32 2.0, %v995
    %v1012 = vsub.f32 2.0, %v996
    %vm1013 = vcmp.eq.s32.totalorder %v399, 15
    %vm1014 = vcmp.eq.s32.totalorder %v400, 15
    %vm1015 = vcmp.eq.s32.totalorder %v401, 15
    %vm1016 = vcmp.eq.s32.totalorder %v402, 15
    %vm1017 = vcmp.eq.s32.totalorder %v403, 15
    %vm1018 = vcmp.eq.s32.totalorder %v404, 15
    %vm1019 = vcmp.eq.s32.totalorder %v405, 15
    %vm1020 = vcmp.eq.s32.totalorder %v406, 15
    %vm1021 = vcmp.eq.s32.totalorder %v407, 15
    %vm1022 = vcmp.eq.s32.totalorder %v408, 15
    %vm1023 = vcmp.eq.s32.totalorder %v409, 15
    %vm1024 = vcmp.eq.s32.totalorder %v410, 15
    %vm1025 = vcmp.eq.s32.totalorder %v411, 15
    %vm1026 = vcmp.eq.s32.totalorder %v412, 15
    %vm1027 = vcmp.eq.s32.totalorder %v413, 15
    %vm1028 = vcmp.eq.s32.totalorder %v414, 15
    %vm1029 = vcmp.eq.s32.totalorder %v419, 0
    %vm1030 = vmand %vm1013, %vm1029
    %vm1031 = vmand %vm1014, %vm1029
    %vm1032 = vmand %vm1015, %vm1029
    %vm1033 = vmand %vm1016, %vm1029
    %vm1034 = vmand %vm1017, %vm1029
    %vm1035 = vmand %vm1018, %vm1029
    %vm1036 = vmand %vm1019, %vm1029
    %vm1037 = vmand %vm1020, %vm1029
    %vm1038 = vmand %vm1021, %vm1029
    %vm1039 = vmand %vm1022, %vm1029
    %vm1040 = vmand %vm1023, %vm1029
    %vm1041 = vmand %vm1024, %vm1029
    %vm1042 = vmand %vm1025, %vm1029
    %vm1043 = vmand %vm1026, %vm1029
    %vm1044 = vmand %vm1027, %vm1029
    %vm1045 = vmand %vm1028, %vm1029
    %v1046 = vsel %vm1030, 1, 0
    %v1047 = vsel %vm1031, 1, 0
    %v1048 = vsel %vm1032, 1, 0
    %v1049 = vsel %vm1033, 1, 0
    %v1050 = vsel %vm1034, 1, 0
    %v1051 = vsel %vm1035, 1, 0
    %v1052 = vsel %vm1036, 1, 0
    %v1053 = vsel %vm1037, 1, 0
    %v1054 = vsel %vm1038, 1, 0
    %v1055 = vsel %vm1039, 1, 0
    %v1056 = vsel %vm1040, 1, 0
    %v1057 = vsel %vm1041, 1, 0
    %v1058 = vsel %vm1042, 1, 0
    %v1059 = vsel %vm1043, 1, 0
    %v1060 = vsel %vm1044, 1, 0
    %v1061 = vsel %vm1045, 1, 0
    %v1062 = vcvt.s32.f32 %v1046
    %v1063 = vcvt.s32.f32 %v1047
    %v1064 = vcvt.s32.f32 %v1048
    %v1065 = vcvt.s32.f32 %v1049
    %v1066 = vcvt.s32.f32 %v1050
    %v1067 = vcvt.s32.f32 %v1051
    %v1068 = vcvt.s32.f32 %v1052
    %v1069 = vcvt.s32.f32 %v1053
    %v1070 = vcvt.s32.f32 %v1054
    %v1071 = vcvt.s32.f32 %v1055
    %v1072 = vcvt.s32.f32 %v1056
    %v1073 = vcvt.s32.f32 %v1057
    %v1074 = vcvt.s32.f32 %v1058
    %v1075 = vcvt.s32.f32 %v1059
    %v1076 = vcvt.s32.f32 %v1060
    %v1077 = vcvt.s32.f32 %v1061
    %v1078 = vsub.f32 %v997, %v1062
    %v1079 = vsub.f32 %v998, %v1063
    %v1080 = vsub.f32 %v999, %v1064
    %v1081 = vsub.f32 %v1000, %v1065
    %v1082 = vsub.f32 %v1001, %v1066
    %v1083 = vsub.f32 %v1002, %v1067
    %v1084 = vsub.f32 %v1003, %v1068
    %v1085 = vsub.f32 %v1004, %v1069
    %v1086 = vsub.f32 %v1005, %v1070
    %v1087 = vsub.f32 %v1006, %v1071
    %v1088 = vsub.f32 %v1007, %v1072
    %v1089 = vsub.f32 %v1008, %v1073
    %v1090 = vsub.f32 %v1009, %v1074
    %v1091 = vsub.f32 %v1010, %v1075
    %v1092 = vsub.f32 %v1011, %v1076
    %v1093 = vsub.f32 %v1012, %v1077
    %v1094 = vmul.f32 %v757, 2.0
    %v1095 = vmul.f32 %v758, 2.0
    %v1096 = vmul.f32 %v759, 2.0
    %v1097 = vmul.f32 %v760, 2.0
    %v1098 = vmul.f32 %v761, 2.0
    %v1099 = vmul.f32 %v762, 2.0
    %v1100 = vmul.f32 %v763, 2.0
    %v1101 = vmul.f32 %v764, 2.0
    %v1102 = vmul.f32 %v765, 2.0
    %v1103 = vmul.f32 %v766, 2.0
    %v1104 = vmul.f32 %v767, 2.0
    %v1105 = vmul.f32 %v768, 2.0
    %v1106 = vmul.f32 %v769, 2.0
    %v1107 = vmul.f32 %v770, 2.0
    %v1108 = vmul.f32 %v771, 2.0
    %v1109 = vmul.f32 %v772, 2.0
    %v1110 = vsel %vm901, %v1094, 0.0
    %v1111 = vsel %vm902, %v1095, 0.0
    %v1112 = vsel %vm903, %v1096, 0.0
    %v1113 = vsel %vm904, %v1097, 0.0
    %v1114 = vsel %vm905, %v1098, 0.0
    %v1115 = vsel %vm906, %v1099, 0.0
    %v1116 = vsel %vm907, %v1100, 0.0
    %v1117 = vsel %vm908, %v1101, 0.0
    %v1118 = vsel %vm909, %v1102, 0.0
    %v1119 = vsel %vm910, %v1103, 0.0
    %v1120 = vsel %vm911, %v1104, 0.0
    %v1121 = vsel %vm912, %v1105, 0.0
    %v1122 = vsel %vm913, %v1106, 0.0
    %v1123 = vsel %vm914, %v1107, 0.0
    %v1124 = vsel %vm915, %v1108, 0.0
    %v1125 = vsel %vm916, %v1109, 0.0
    %v1126 = vmul.f32 %v1078, %v853
    %v1127 = vmul.f32 %v1079, %v854
    %v1128 = vmul.f32 %v1080, %v855
    %v1129 = vmul.f32 %v1081, %v856
    %v1130 = vmul.f32 %v1082, %v857
    %v1131 = vmul.f32 %v1083, %v858
    %v1132 = vmul.f32 %v1084, %v859
    %v1133 = vmul.f32 %v1085, %v860
    %v1134 = vmul.f32 %v1086, %v861
    %v1135 = vmul.f32 %v1087, %v862
    %v1136 = vmul.f32 %v1088, %v863
    %v1137 = vmul.f32 %v1089, %v864
    %v1138 = vmul.f32 %v1090, %v865
    %v1139 = vmul.f32 %v1091, %v866
    %v1140 = vmul.f32 %v1092, %v867
    %v1141 = vmul.f32 %v1093, %v868
    %v1142 = vsel %vm933, %v1126, 0.0
    %v1143 = vsel %vm934, %v1127, 0.0
    %v1144 = vsel %vm935, %v1128, 0.0
    %v1145 = vsel %vm936, %v1129, 0.0
    %v1146 = vsel %vm937, %v1130, 0.0
    %v1147 = vsel %vm938, %v1131, 0.0
    %v1148 = vsel %vm939, %v1132, 0.0
    %v1149 = vsel %vm940, %v1133, 0.0
    %v1150 = vsel %vm941, %v1134, 0.0
    %v1151 = vsel %vm942, %v1135, 0.0
    %v1152 = vsel %vm943, %v1136, 0.0
    %v1153 = vsel %vm944, %v1137, 0.0
    %v1154 = vsel %vm945, %v1138, 0.0
    %v1155 = vsel %vm946, %v1139, 0.0
    %v1156 = vsel %vm947, %v1140, 0.0
    %v1157 = vsel %vm948, %v1141, 0.0
    %v1158 = vadd.f32 %v1110, %v1142
    %v1159 = vadd.f32 %v1111, %v1143
    %v1160 = vadd.f32 %v1112, %v1144
    %v1161 = vadd.f32 %v1113, %v1145
    %v1162 = vadd.f32 %v1114, %v1146
    %v1163 = vadd.f32 %v1115, %v1147
    %v1164 = vadd.f32 %v1116, %v1148
    %v1165 = vadd.f32 %v1117, %v1149
    %v1166 = vadd.f32 %v1118, %v1150
    %v1167 = vadd.f32 %v1119, %v1151
    %v1168 = vadd.f32 %v1120, %v1152
    %v1169 = vadd.f32 %v1121, %v1153
    %v1170 = vadd.f32 %v1122, %v1154
    %v1171 = vadd.f32 %v1123, %v1155
    %v1172 = vadd.f32 %v1124, %v1156
    %v1173 = vadd.f32 %v1125, %v1157
    %v1174 = vadd.f32 %v1158, %v1159
    %v1175 = vadd.f32 %v1174, %v1160
    %v1176 = vadd.f32 %v1175, %v1161
    %v1177 = vadd.f32 %v1176, %v1162
    %v1178 = vadd.f32 %v1177, %v1163
    %v1179 = vadd.f32 %v1178, %v1164
    %v1180 = vadd.f32 %v1179, %v1165
    %v1181 = vadd.f32 %v1180, %v1166
    %v1182 = vadd.f32 %v1181, %v1167
    %v1183 = vadd.f32 %v1182, %v1168
    %v1184 = vadd.f32 %v1183, %v1169
    %v1185 = vadd.f32 %v1184, %v1170
    %v1186 = vadd.f32 %v1185, %v1171
    %v1187 = vadd.f32 %v1186, %v1172
    %v1188 = vadd.f32 %v1187, %v1173
    %v1189 = vrot.slane %v1188, 4
    %v1190 = vadd.f32 %v1188, %v1189
    %v1191 = vrot.slane %v1190, 2
    %v1192 = vadd.f32 %v1190, %v1191
    %v1193 = vrot.slane %v1192, 1
    %v1194 = vadd.f32 %v1192, %v1193
    %1195 = vst [vmem:[#allocation5] sm:$0x1] %v1194
    // Predicated region
    $region18: #{tpu_custom_call.1} parent=1 // pred_check
      _
    $region19: #{tpu_custom_call.1} parent=1 // pred_check_branch
      %1197 = sbr.rel (0) target = $region21
    $region20: #{tpu_custom_call.1} parent=1 // pred_region
      %1199 = vsyncadd [#allocation6], 0
      %s1201 = sshll.u32 [#allocation5], 4
      %s1202 = int_to_ptr.vmem [resolvable:$true] %s1201
      %s1203 = sshll.u32 %s6, 4
      %s1204 = int_to_ptr.hbm [resolvable:$true] %s1203
      %1206 = dma.vmem_to_hbm [thread:$0]  %s1202, 16, %s1204, [#allocation6]
    $region21: #{tpu_custom_call.1} parent=1 // pred_fallthru
      _
    // Predicated region
    $region22: #{tpu_custom_call.1} parent=1 // pred_check
      _
    $region23: #{tpu_custom_call.1} parent=1 // pred_check_branch
      %1208 = sbr.rel (0) target = $region25
    $region24: #{tpu_custom_call.1} parent=1 // pred_region
      %1210 = dma.done [#allocation6], 16
    $region25: #{tpu_custom_call.1} parent=1 // pred_fallthru
      _
    %1211 = vsyncpa [#allocation6], 1

</llo_original>
